<compile_context>
chip_gen: v5e
topology: v5e:2x2
jax: 0.10.0
libtpu: 0.0.40
codegen_flags: <defaults>
</compile_context>

<pallas_src>
import functools

import jax
import jax.numpy as jnp
import numpy as np
from jax.experimental import pallas as pl
from jax.experimental.pallas import tpu as pltpu


# --------------------------------------------------------------------------
# helpers
# --------------------------------------------------------------------------
def _round_up(v, m):
    return ((v + m - 1) // m) * m


def _cdiv(a, b):
    return -(-a // b)


def _maybe_single_buffered(block_shape, index_map, single):
    """BlockSpec that is single-buffered when its block never changes."""
    if single:
        try:
            return pl.BlockSpec(block_shape, index_map,
                                pipeline_mode=pl.Buffered(1))
        except TypeError:
            # Older BlockSpec signature without pipeline_mode: fall through.
            pass
    return pl.BlockSpec(block_shape, index_map)


# --------------------------------------------------------------------------
# Pallas kernel: fused multi-head linear  (one tile of rows x one tile of lanes)
# --------------------------------------------------------------------------
def _mh_linear_kernel(x_ref, w_ref, b_ref, o_ref):
    # x_ref : (tb, in_features)        activation row tile
    # w_ref : (in_features, tn)        folded per-head weights (lane tile)
    # b_ref : (1, tn)  float32         folded bias (kept f32 for exact numerics)
    # o_ref : (tb, tn)
    acc = jnp.dot(x_ref[...], w_ref[...], preferred_element_type=jnp.float32)
    acc = acc + b_ref[...]            # bias added on the f32 accumulator
    o_ref[...] = acc.astype(o_ref.dtype)


# --------------------------------------------------------------------------
# one-time parameter layout prep (do at init time, NOT per forward call)
# --------------------------------------------------------------------------
def fold_params(w_stacked, b_stacked=None):
    """Fold (H, out, in) PyTorch-layout weights into a lane-dense (in, H*out)
    matrix; bias into a (1, H*out) f32 row.  Column block h*out:(h+1)*out of
    the result equals W_h^T, so the kernel output reshapes straight into
    torch.stack(outputs, dim=1)."""
    H, out_f, in_f = w_stacked.shape
    w_all = jnp.transpose(w_stacked, (2, 0, 1)).reshape(in_f, H * out_f)
    if b_stacked is None:
        b_all = jnp.zeros((1, H * out_f), jnp.float32)
    else:
        b_all = jnp.asarray(b_stacked, jnp.float32).reshape(1, H * out_f)
    return w_all, b_all


# --------------------------------------------------------------------------
# forward
# --------------------------------------------------------------------------
def multi_head_linear(x, w_all, b_all, *, num_heads, block_rows=2048,
                      block_cols=2048, io_dtype=None):
    """Forward pass of MultiHeadLinearLayer (eval mode, dropout == identity).

    Args:
      x:         (B, in_features)
      w_all:     (in_features, num_heads*out_features)   -- from fold_params
      b_all:     (1, num_heads*out_features) float32     -- from fold_params
      num_heads: number of heads (static)
      io_dtype:  optional compute/IO dtype (e.g. jnp.bfloat16) for the matmul
                 operands and output; bias add stays f32.
    Returns:
      (B, num_heads, out_features)
    """
    B, in_f = x.shape
    in_f_w, N = w_all.shape
    assert in_f_w == in_f
    assert N % num_heads == 0
    out_f = N // num_heads

    cdt = jnp.dtype(io_dtype) if io_dtype is not None else jnp.dtype(x.dtype)
    itemsize = cdt.itemsize

    # ---- lane (N) tiling with VMEM budget guard --------------------------
    # Keep one weight tile <= ~6 MiB so (weight + x + out) tiles stay far
    # under the default scoped-VMEM budgets on every generation (incl. v7x).
    max_wtile_bytes = 6 * (1 << 20)
    tn_budget = max(128, ((max_wtile_bytes // max(in_f * itemsize, 1)) // 128) * 128)
    tn = min(block_cols, tn_budget, _round_up(N, 128))
    if tn >= N:
        tn, Np, gn = N, N, 1            # whole output width lane-dense in one tile
    else:
        Np = _round_up(N, tn)           # tn is a multiple of 128 here
        gn = Np // tn

    # ---- row (B) tiling: adaptive, minimal padding ------------------------
    Bp = _round_up(B, 8)                # pad only to the sublane multiple
    # VMEM guard on the row tile (x tile + out tile, double-buffered by Pallas)
    per_row_bytes = in_f * itemsize + tn * itemsize
    tb_cap = max(8, ((12 * (1 << 20)) // max(per_row_bytes, 1)) // 8 * 8)
    rows_cap = max(8, min(_round_up(block_rows, 8), tb_cap))
    gm = _cdiv(Bp, rows_cap)
    # Keep >=2 (up to 4) row steps once each step still has >=256 real rows,
    # so v7x megacore gets both TensorCores busy; otherwise one big step.
    min_rows_per_step = 256
    if Bp >= 2 * min_rows_per_step:
        gm = max(gm, min(4, Bp // min_rows_per_step))
    tb = min(_round_up(_cdiv(Bp, gm), 8), rows_cap)
    gm = _cdiv(Bp, tb)
    Bp = gm * tb                        # worst-case extra padding: a few rows

    # ---- minimal padding / optional cast ----------------------------------
    xp = x if x.dtype == cdt else x.astype(cdt)
    if Bp != B:
        xp = jnp.pad(xp, ((0, Bp - B), (0, 0)))
    wp = w_all if w_all.dtype == cdt else w_all.astype(cdt)
    bp = jnp.asarray(b_all, jnp.float32).reshape(1, N)
    if Np != N:
        wp = jnp.pad(wp, ((0, 0), (0, Np - N)))
        bp = jnp.pad(bp, ((0, 0), (0, Np - N)))

    out_dtype = cdt
    cost = pl.CostEstimate(
        flops=2 * Bp * in_f * Np,
        transcendentals=0,
        bytes_accessed=(Bp * in_f + in_f * Np) * itemsize
        + Np * 4
        + Bp * Np * jnp.dtype(out_dtype).itemsize,
    )

    consts_single = (gn == 1)  # weights/bias never change across the grid

    out2d = pl.pallas_call(
        _mh_linear_kernel,
        out_shape=jax.ShapeDtypeStruct((Bp, Np), out_dtype),
        grid=(gm, gn),
        in_specs=[
            # x stays resident across the inner lane loop (independent of j)
            pl.BlockSpec((tb, in_f), lambda i, j: (i, 0)),
            _maybe_single_buffered((in_f, tn), lambda i, j: (0, j), consts_single),
            _maybe_single_buffered((1, tn), lambda i, j: (0, j), consts_single),
        ],
        out_specs=pl.BlockSpec((tb, tn), lambda i, j: (i, j)),
        compiler_params=pltpu.CompilerParams(
            dimension_semantics=("parallel", "parallel")),
        cost_estimate=cost,
    )(xp, wp, bp)

    out2d = out2d[:B, :N]
    # (B, H*out_f) -> (B, H, out_f)  == torch.stack(outputs, dim=1)
    return out2d.reshape(B, num_heads, out_f)


# --------------------------------------------------------------------------
# pure-JAX reference (PyTorch-layout weights)
# --------------------------------------------------------------------------
def reference_forward(x, w_stacked, b_stacked=None):
    out = jnp.einsum("bi,hoi->bho", x, w_stacked)
    if b_stacked is not None:
        out = out + b_stacked[None, :, :]
    return out


# --------------------------------------------------------------------------
if __name__ == "__main__":
    root_key = jax.random.PRNGKey(0)

    def run_case(idx, batch, in_features, out_features, num_heads, *,
                 block_rows=2048, block_cols=2048):
        key = jax.random.fold_in(root_key, idx)
        kx, kw, kb = jax.random.split(key, 3)
        bound = 1.0 / np.sqrt(in_features)
        x = jax.random.normal(kx, (batch, in_features), jnp.float32)
        w = jax.random.uniform(kw, (num_heads, out_features, in_features),
                               jnp.float32, minval=-bound, maxval=bound)
        b = jax.random.uniform(kb, (num_heads, out_features), jnp.float32,
                               minval=-bound, maxval=bound)

        # One-time layout prep at parameter-init time.
        w_all, b_all = fold_params(w, b)

        fwd = jax.jit(functools.partial(
            multi_head_linear, num_heads=num_heads,
            block_rows=block_rows, block_cols=block_cols))
        out = jax.block_until_ready(fwd(x, w_all, b_all))

        ref = reference_forward(x, w, b)
        np.testing.assert_allclose(np.asarray(out), np.asarray(ref),
                                   rtol=1e-5, atol=1e-5)
        assert out.shape == (batch, num_heads, out_features)

    # Base case: lane-dense output (num_heads*out_features == 128), aligned B.
    run_case(0, batch=8, in_features=64, out_features=32, num_heads=4)
    # Awkward batch size: exercises the minimal (13 -> 16) row padding path.
    run_case(1, batch=13, in_features=64, out_features=32, num_heads=4)
    # Forced lane tiling: exercises the (row, lane) 2-D grid path.
    run_case(2, batch=16, in_features=64, out_features=32, num_heads=8,
             block_cols=128)

    print("KERNEL_OK")
</pallas_src>

<mosaic_0001>
module attributes {stable_mosaic.version = 11 : i64} {
  func.func @_mh_linear_kernel(%arg0: i32, %arg1: i32, %arg2: memref<8x64xf32, #tpu.memory_space<vmem>>, %arg3: memref<64x128xf32, #tpu.memory_space<vmem>>, %arg4: memref<1x128xf32, #tpu.memory_space<vmem>>, %arg5: memref<8x128xf32, #tpu.memory_space<vmem>>) attributes {dimension_semantics = [#tpu.dimension_semantics<parallel>, #tpu.dimension_semantics<parallel>], iteration_bounds = array<i64: 1, 1>, scalar_prefetch = 0 : i64, scratch_operands = 0 : i64, tpu.core_type = #tpu.core_type<tc>, window_params = [{transform_indices = @transform_0, window_bounds = array<i64: 8, 64>}, {pipeline_mode = #tpu.pipeline_mode<synchronous>, transform_indices = @transform_1, window_bounds = array<i64: 64, 128>}, {pipeline_mode = #tpu.pipeline_mode<synchronous>, transform_indices = @transform_2, window_bounds = array<i64: 1, 128>}, {transform_indices = @transform_3, window_bounds = array<i64: 8, 128>}]} {
    %c0 = arith.constant 0 : index
    %c0_0 = arith.constant 0 : index
    %0 = vector.load %arg2[%c0, %c0_0] : memref<8x64xf32, #tpu.memory_space<vmem>>, vector<8x64xf32>
    %c0_1 = arith.constant 0 : index
    %c0_2 = arith.constant 0 : index
    %1 = vector.load %arg3[%c0_1, %c0_2] : memref<64x128xf32, #tpu.memory_space<vmem>>, vector<64x128xf32>
    %cst = arith.constant dense<0.000000e+00> : vector<8x128xf32>
    %2 = tpu.matmul %0, %1, %cst {dimension_numbers = #tpu.dot_dimension_numbers<[1], [0], [0], [1], [0, 0, 1, 1], [], []>} : vector<8x64xf32>, vector<64x128xf32>, vector<8x128xf32> -> vector<8x128xf32>
    %c0_3 = arith.constant 0 : index
    %c0_4 = arith.constant 0 : index
    %3 = vector.load %arg4[%c0_3, %c0_4] : memref<1x128xf32, #tpu.memory_space<vmem>>, vector<1x128xf32>
    %4 = vector.broadcast %3 : vector<1x128xf32> to vector<8x128xf32>
    %5 = arith.addf %2, %4 : vector<8x128xf32>
    %c0_5 = arith.constant 0 : index
    %c0_6 = arith.constant 0 : index
    %6 = vector.load %arg5[%c0_5, %c0_6] : memref<8x128xf32, #tpu.memory_space<vmem>>, vector<8x128xf32>
    tpu.vector_store %arg5[%c0_5, %c0_6], %5 {strides = array<i32>} : memref<8x128xf32, #tpu.memory_space<vmem>>, vector<8x128xf32>,
    return
  }
  func.func @transform_0(%arg0: i32, %arg1: i32) -> (i32, i32) {
    %c0_i32 = arith.constant 0 : i32
    %c0_i32_0 = arith.constant 0 : i32
    return %arg0, %c0_i32 : i32, i32
  }
  func.func @transform_1(%arg0: i32, %arg1: i32) -> (i32, i32) {
    %c0_i32 = arith.constant 0 : i32
    %c0_i32_0 = arith.constant 0 : i32
    return %c0_i32, %arg1 : i32, i32
  }
  func.func @transform_2(%arg0: i32, %arg1: i32) -> (i32, i32) {
    %c0_i32 = arith.constant 0 : i32
    %c0_i32_0 = arith.constant 0 : i32
    return %c0_i32, %arg1 : i32, i32
  }
  func.func @transform_3(%arg0: i32, %arg1: i32) -> (i32, i32) {
    %c0_i32 = arith.constant 0 : i32
    return %arg0, %arg1 : i32, i32
  }
}

</mosaic_0001>

<llo_original>
// kernel: multi_head_linear.1
$region0: #{multi_head_linear.1}
  #allocation0 [shape = 'u32[]', space=smem, size = 0x4, offset = 0x4, fixed_abs, tag = 'smem constant byte address 0x4 - core index']
  #allocation1 [shape = 'u32[72,128]{1,0:T(1,128)}', space=vmem, size = 0x9000, scoped, tag = 'internal scratch']
  %s0 = inlined_call_operand.hbm [shape: f32[8,64], index: 0, kind: input, shape index: {}]
  %s1 = inlined_call_operand.hbm [shape: f32[64,128], index: 1, kind: input, shape index: {}]
  %s2 = inlined_call_operand.vmem [shape: f32[1,128], index: 2, kind: input, shape index: {}]
  %s3 = inlined_call_operand.vmem [shape: f32[8,128], index: 3, kind: output, shape index: {}]
  %s4 = sld [smem:[#allocation0]]
  $region30: #{multi_head_linear.1} parent=0
    _
  %s6 = ssub.s32 1, %s4
  %s7 = scalar_select 0, %s6, %s4
  $region1: #{multi_head_linear.1} parent=0
    #allocation2 [shape = 'u8[4096]{0}', space=vmem, size = 0x1000, scoped, tag = 'input window, operand 0, single buffered']
    #allocation3 [shape = 's32[1]{0}', space=sflag, size = 0x4, scoped, tag = 'scoped memory for multi_head_linear.1']
    #allocation4 [shape = 'u8[32768]{0}', space=vmem, size = 0x8000, scoped, tag = 'input window, operand 1, single buffered']
    #allocation5 [shape = 's32[1]{0}', space=sflag, size = 0x4, scoped, tag = 'scoped memory for multi_head_linear.1']
    %8 = vsyncpa [#allocation3], 0
    %9 = vsyncpa [#allocation5], 0
    // Predicated region
    $region2: #{multi_head_linear.1} parent=1 // pred_check
      _
    $region3: #{multi_head_linear.1} parent=1 // pred_check_branch
      %11 = sbr.rel (0) target = $region5
    $region4: #{multi_head_linear.1} parent=1 // pred_region
      %13 = vsyncadd [#allocation3], 0
      %s15 = sshll.u32 %s0, 4
      %s16 = int_to_ptr.hbm [resolvable:$true] %s15
      %s17 = sshll.u32 [#allocation2], 4
      %s18 = int_to_ptr.vmem [resolvable:$true] %s17
      %20 = dma.hbm_to_vmem [thread:$0]  %s16, 128, %s18, [#allocation3]
    $region5: #{multi_head_linear.1} parent=1 // pred_fallthru
      _
    // Predicated region
    $region6: #{multi_head_linear.1} parent=1 // pred_check
      _
    $region7: #{multi_head_linear.1} parent=1 // pred_check_branch
      %22 = sbr.rel (0) target = $region9
    $region8: #{multi_head_linear.1} parent=1 // pred_region
      %24 = vsyncadd [#allocation5], 0
      %s25 = sshll.u32 %s1, 4
      %s26 = int_to_ptr.hbm [resolvable:$true] %s25
      %s27 = sshll.u32 [#allocation4], 4
      %s28 = int_to_ptr.vmem [resolvable:$true] %s27
      %33 = dma.hbm_to_vmem [thread:$0]  %s26, 1024, %s28, [#allocation5], 128, 128, 8
    $region9: #{multi_head_linear.1} parent=1 // pred_fallthru
      _
    // Predicated region
    $region10: #{multi_head_linear.1} parent=1 // pred_check
      _
    $region11: #{multi_head_linear.1} parent=1 // pred_check_branch
      %35 = sbr.rel (0) target = $region13
    $region12: #{multi_head_linear.1} parent=1 // pred_region
      _
    $region13: #{multi_head_linear.1} parent=1 // pred_fallthru
      _
    // Predicated region
    $region14: #{multi_head_linear.1} parent=1 // pred_check
      _
    $region15: #{multi_head_linear.1} parent=1 // pred_check_branch
      %37 = sbr.rel (0) target = $region17
    $region16: #{multi_head_linear.1} parent=1 // pred_region
      %39 = dma.done [#allocation3], 128
    $region17: #{multi_head_linear.1} parent=1 // pred_fallthru
      _
    // Predicated region
    $region18: #{multi_head_linear.1} parent=1 // pred_check
      _
    $region19: #{multi_head_linear.1} parent=1 // pred_check_branch
      %41 = sbr.rel (0) target = $region21
    $region20: #{multi_head_linear.1} parent=1 // pred_region
      %43 = dma.done [#allocation5], 1024
    $region21: #{multi_head_linear.1} parent=1 // pred_fallthru
      _
    %v44 = vld [vmem:[#allocation2] sm:$0xff]
    %v45 = vld [vmem:[#allocation4] sm:$0xff]
    %v46 = vld [vmem:[#allocation4 + $0x8] sm:$0xff]
    %v47 = vld [vmem:[#allocation4 + $0x10] sm:$0xff]
    %v48 = vld [vmem:[#allocation4 + $0x18] sm:$0xff]
    %v49 = vld [vmem:[#allocation4 + $0x20] sm:$0xff]
    %v50 = vld [vmem:[#allocation4 + $0x28] sm:$0xff]
    %v51 = vld [vmem:[#allocation4 + $0x30] sm:$0xff]
    %v52 = vld [vmem:[#allocation4 + $0x38] sm:$0xff]
    %v53 = vld [vmem:[%s2] sm:$0x1]
    %v55 = vperm.slane %v53, 0
    %vm57 = vcmask 523264
    %v59 = vsel %vm57, %v44, 0
    %61 = vmatpush.msra.mxu0 0.0
    %62 = vmatpush.msra.mxu0 0.0
    %63 = vmatpush.msra.mxu0 0.0
    %64 = vmatpush.msra.mxu0 0.0
    %65 = vmatpush.msra.mxu0 0.0
    %66 = vmatpush.msra.mxu0 0.0
    %67 = vmatpush.msra.mxu0 0.0
    %68 = vmatpush.msra.mxu0 0.0
    %69 = vmatpush.msra.mxu0 %v52
    %70 = vmatpush.msra.mxu0 %v51
    %71 = vmatpush.msra.mxu0 %v50
    %72 = vmatpush.msra.mxu0 %v49
    %73 = vmatpush.msra.mxu0 %v48
    %74 = vmatpush.msra.mxu0 %v47
    %75 = vmatpush.msra.mxu0 %v46
    %76 = vmatpush.msra.mxu0 %v45
    %77 = vmatmul.f32.gmra.mxu0 %v59
    %v78 = vpop.f32.mrf.mxu0
    %v79 = vadd.f32 %v55, %v78
    %80 = vdwg.mxu0
    %81 = vst [vmem:[%s3] sm:$0xff] %v79
    // Predicated region
    $region22: #{multi_head_linear.1} parent=1 // pred_check
      _
    $region23: #{multi_head_linear.1} parent=1 // pred_check_branch
      %83 = sbr.rel (0) target = $region25
    $region24: #{multi_head_linear.1} parent=1 // pred_region
      _
    $region25: #{multi_head_linear.1} parent=1 // pred_fallthru
      _
    // Predicated region
    $region26: #{multi_head_linear.1} parent=1 // pred_check
      _
    $region27: #{multi_head_linear.1} parent=1 // pred_check_branch
      %85 = sbr.rel (0) target = $region29
    $region28: #{multi_head_linear.1} parent=1 // pred_region
      _
    $region29: #{multi_head_linear.1} parent=1 // pred_fallthru
      _
    %86 = vsyncpa [#allocation3], 1
    %87 = vsyncpa [#allocation5], 1

</llo_original>
